<compile_context>
chip_gen: v7x
topology: tpu7x:2x2x1
jax: 0.10.0
libtpu: 0.0.40
codegen_flags: <defaults>
</compile_context>

<pallas_src>
import functools

import jax
import jax.numpy as jnp
from jax import lax
from jax.experimental import pallas as pl
from jax.experimental.pallas import tpu as pltpu


def _conv_stats_kernel(xc_ref, w_ref, b_ref, stats_ref):
    """One (batch, L-tile): dilated conv via a single K=C_in*ks matmul + partial BN stats."""
    y = jnp.dot(w_ref[...], xc_ref[0],
                preferred_element_type=jnp.float32)          # (C_out, Lt) f32
    y = y + b_ref[...]                                       # conv bias (C_out, 1)
    s = jnp.sum(y, axis=1, keepdims=True)                    # (C_out, 1)
    sq = jnp.sum(y * y, axis=1, keepdims=True)               # (C_out, 1)
    # Per-tile partial stats; kept C_out-on-sublane to match the conv layout
    # (a lane-dense transpose would cost an XLU op per step for a 64 B store).
    stats_ref[0, 0] = jnp.concatenate([s, sq], axis=1)       # (C_out, 2)


def _conv_bn_lrelu_kernel(xc_ref, w_ref, scale_ref, shift_ref, o_ref, *, slope):
    """One (batch, L-tile): fused conv + BatchNorm(train, folded affine) + LeakyReLU."""
    y = jnp.dot(w_ref[...], xc_ref[0],
                preferred_element_type=jnp.float32)          # (C_out, Lt) f32
    y = y * scale_ref[...] + shift_ref[...]                  # BN (+ conv bias) folded
    o_ref[0] = jnp.where(y >= 0, y, slope * y).astype(o_ref.dtype)


def _pick_l_tile(length):
    """Largest lane-dense tile (multiple of 128) dividing `length`, else full length."""
    for t in (2048, 1024, 512, 256, 128):
        if length % t == 0:
            return t
    return length  # small / ragged lengths: single full-width tile


def bnsn_conv1d_dblock(x, weight, bias, gamma, beta, *,
                       kernel_size, dilation, eps=1e-5, slope=0.01,
                       dot_dtype=jnp.bfloat16):
    """x: (N, C_in, L) f32; weight: (C_out, C_in, ks) already spectrally normalized."""
    N, C_in, L = x.shape
    C_out = weight.shape[0]
    ks = kernel_size
    pad = dilation * ((ks - 1) // 2)
    L_out = L + 2 * pad - dilation * (ks - 1)      # == L for odd ks ('same')
    K = C_in * ks

    # --- im2col slab, built once in the wrapper (lane-aligned, no in-kernel
    #     unaligned slices).  x_col[n, k*C_in + ci, l] = x_pad[n, ci, l + k*dil].
    x_pad = jnp.pad(x, ((0, 0), (0, 0), (pad, pad)))
    x_col = jnp.concatenate(
        [x_pad[:, :, k * dilation:k * dilation + L_out] for k in range(ks)],
        axis=1).astype(dot_dtype)                  # (N, K, L_out)
    # Matching stacked weight: w2[co, k*C_in + ci] = weight[co, ci, k].
    w2 = jnp.transpose(weight, (0, 2, 1)).reshape(C_out, K).astype(dot_dtype)
    b2 = bias.reshape(C_out, 1).astype(jnp.float32)

    l_tile = _pick_l_tile(L_out)
    n_lt = L_out // l_tile
    grid = (N, n_lt)
    par = pltpu.CompilerParams(dimension_semantics=("parallel", "parallel"))

    # --- pass 1: per-(batch, L-tile) partial BN statistics ---------------------
    stats = pl.pallas_call(
        _conv_stats_kernel,
        out_shape=jax.ShapeDtypeStruct((N, n_lt, C_out, 2), jnp.float32),
        grid=grid,
        in_specs=[pl.BlockSpec((1, K, l_tile), lambda n, li: (n, 0, li)),
                  pl.BlockSpec((C_out, K), lambda n, li: (0, 0)),
                  pl.BlockSpec((C_out, 1), lambda n, li: (0, 0))],
        out_specs=pl.BlockSpec((1, 1, C_out, 2), lambda n, li: (n, li, 0, 0)),
        compiler_params=par,
    )(x_col, w2, b2)

    # --- tiny cross-batch reduction + BN folding in plain JAX ------------------
    stats_sum = jnp.sum(stats, axis=(0, 1))        # (C_out, 2)
    count = float(N * L_out)
    mean = stats_sum[:, 0] / count                 # includes conv bias
    var = jnp.maximum(stats_sum[:, 1] / count - mean * mean, 0.0)  # biased var
    inv = lax.rsqrt(var + eps)
    scale_c = gamma.astype(jnp.float32) * inv                       # (C_out,)
    shift_c = (bias.astype(jnp.float32) - mean) * scale_c + beta.astype(jnp.float32)
    scale2 = scale_c.reshape(C_out, 1)
    shift2 = shift_c.reshape(C_out, 1)

    # --- pass 2: fused conv + BN affine + LeakyReLU (no HBM round trip of y) ---
    out = pl.pallas_call(
        functools.partial(_conv_bn_lrelu_kernel, slope=slope),
        out_shape=jax.ShapeDtypeStruct((N, C_out, L_out), jnp.float32),
        grid=grid,
        in_specs=[pl.BlockSpec((1, K, l_tile), lambda n, li: (n, 0, li)),
                  pl.BlockSpec((C_out, K), lambda n, li: (0, 0)),
                  pl.BlockSpec((C_out, 1), lambda n, li: (0, 0)),
                  pl.BlockSpec((C_out, 1), lambda n, li: (0, 0))],
        out_specs=pl.BlockSpec((1, C_out, l_tile), lambda n, li: (n, 0, li)),
        compiler_params=par,
    )(x_col, w2, scale2, shift2)
    return out


def _reference(x, weight, bias, gamma, beta, *, kernel_size, dilation,
               eps=1e-5, slope=0.01):
    """Pure-JAX reference (lax dilated conv + training-mode BN + LeakyReLU)."""
    pad = dilation * ((kernel_size - 1) // 2)
    y = lax.conv_general_dilated(
        x, weight, window_strides=(1,), padding=[(pad, pad)],
        rhs_dilation=(dilation,),
        dimension_numbers=("NCH", "OIH", "NCH"))
    y = y + bias[None, :, None]
    mean = jnp.mean(y, axis=(0, 2), keepdims=True)
    var = jnp.mean((y - mean) ** 2, axis=(0, 2), keepdims=True)
    yn = (y - mean) / jnp.sqrt(var + eps)
    yn = yn * gamma[None, :, None] + beta[None, :, None]
    return jnp.where(yn >= 0, yn, slope * yn)


if __name__ == "__main__":
    # Small shapes consistent with the module's forward.
    N, C_in, C_out, L = 2, 4, 8, 16
    kernel_size, dilation = 3, 2

    key = jax.random.PRNGKey(0)
    kx, kw, kb = jax.random.split(key, 3)
    x = jax.random.normal(kx, (N, C_in, L), dtype=jnp.float32)

    # Deterministic synthetic conv parameters.
    w_raw = jax.random.normal(kw, (C_out, C_in, kernel_size), dtype=jnp.float32) * 0.3
    bias = jax.random.normal(kb, (C_out,), dtype=jnp.float32) * 0.1

    # Spectral normalization of the conv weight (exact sigma via SVD; PyTorch
    # power-iterates toward this same quantity).
    sigma = jnp.linalg.svd(w_raw.reshape(C_out, -1), compute_uv=False)[0]
    weight = w_raw / sigma

    # BatchNorm1d default affine init.
    gamma = jnp.ones((C_out,), dtype=jnp.float32)
    beta = jnp.zeros((C_out,), dtype=jnp.float32)

    out = bnsn_conv1d_dblock(x, weight, bias, gamma, beta,
                             kernel_size=kernel_size, dilation=dilation)
    out = jax.block_until_ready(out)

    ref = _reference(x, weight, bias, gamma, beta,
                     kernel_size=kernel_size, dilation=dilation)
    assert out.shape == ref.shape == (N, C_out, L)
    err = float(jnp.max(jnp.abs(out - ref)))
    # bf16 MXU inputs (f32 accumulation) leave a few e-3 of quantization noise
    # after the BN rescale; real bugs produce O(1) errors.
    assert err < 3e-2, err

    print("KERNEL_OK")
</pallas_src>

<mosaic_0001>
module attributes {stable_mosaic.version = 11 : i64} {
  func.func @_conv_stats_kernel(%arg0: i32, %arg1: i32, %arg2: memref<1x12x16xbf16, #tpu.memory_space<vmem>>, %arg3: memref<8x12xbf16, #tpu.memory_space<vmem>>, %arg4: memref<8x1xf32, #tpu.memory_space<vmem>>, %arg5: memref<1x1x8x2xf32, #tpu.memory_space<vmem>>) attributes {dimension_semantics = [#tpu.dimension_semantics<parallel>, #tpu.dimension_semantics<parallel>], iteration_bounds = array<i64: 2, 1>, scalar_prefetch = 0 : i64, scratch_operands = 0 : i64, tpu.core_type = #tpu.core_type<tc>, window_params = [{transform_indices = @transform_0, window_bounds = array<i64: 1, 12, 16>}, {pipeline_mode = #tpu.pipeline_mode<synchronous>, transform_indices = @transform_1, window_bounds = array<i64: 8, 12>}, {pipeline_mode = #tpu.pipeline_mode<synchronous>, transform_indices = @transform_2, window_bounds = array<i64: 8, 1>}, {transform_indices = @transform_3, window_bounds = array<i64: 1, 1, 8, 2>}]} {
    %c0 = arith.constant 0 : index
    %c0_0 = arith.constant 0 : index
    %0 = vector.load %arg3[%c0, %c0_0] : memref<8x12xbf16, #tpu.memory_space<vmem>>, vector<8x12xbf16>
    %c0_1 = arith.constant 0 : index
    %c0_2 = arith.constant 0 : index
    %c0_3 = arith.constant 0 : index
    %1 = vector.load %arg2[%c0_1, %c0_2, %c0_3] : memref<1x12x16xbf16, #tpu.memory_space<vmem>>, vector<1x12x16xbf16>
    %2 = vector.shape_cast %1 : vector<1x12x16xbf16> to vector<12x16xbf16>
    %cst = arith.constant dense<0.000000e+00> : vector<8x16xf32>
    %3 = tpu.matmul %0, %2, %cst {dimension_numbers = #tpu.dot_dimension_numbers<[1], [0], [0], [1], [0, 0, 1, 1], [], []>} : vector<8x12xbf16>, vector<12x16xbf16>, vector<8x16xf32> -> vector<8x16xf32>
    %c0_4 = arith.constant 0 : index
    %c0_5 = arith.constant 0 : index
    %4 = vector.load %arg4[%c0_4, %c0_5] : memref<8x1xf32, #tpu.memory_space<vmem>>, vector<8x1xf32>
    %5 = vector.broadcast %4 : vector<8x1xf32> to vector<8x16xf32>
    %6 = arith.addf %3, %5 : vector<8x16xf32>
    %cst_6 = arith.constant dense<0.000000e+00> : vector<8xf32>
    %7 = vector.multi_reduction <add>, %6, %cst_6 [1] : vector<8x16xf32> to vector<8xf32>
    %8 = vector.shape_cast %7 : vector<8xf32> to vector<8x1xf32>
    %9 = arith.mulf %6, %6 : vector<8x16xf32>
    %cst_7 = arith.constant dense<0.000000e+00> : vector<8xf32>
    %10 = vector.multi_reduction <add>, %9, %cst_7 [1] : vector<8x16xf32> to vector<8xf32>
    %11 = vector.shape_cast %10 : vector<8xf32> to vector<8x1xf32>
    %12 = tpu.concatenate %8, %11 in 1 : vector<8x1xf32>, vector<8x1xf32> -> vector<8x2xf32>
    %c0_8 = arith.constant 0 : index
    %c0_9 = arith.constant 0 : index
    %c0_10 = arith.constant 0 : index
    %c0_11 = arith.constant 0 : index
    %13 = vector.load %arg5[%c0_8, %c0_9, %c0_10, %c0_11] : memref<1x1x8x2xf32, #tpu.memory_space<vmem>>, vector<1x1x8x2xf32>
    %14 = vector.shape_cast %13 : vector<1x1x8x2xf32> to vector<8x2xf32>
    %15 = vector.shape_cast %12 : vector<8x2xf32> to vector<1x1x8x2xf32>
    tpu.vector_store %arg5[%c0_8, %c0_9, %c0_10, %c0_11], %15 {strides = array<i32>} : memref<1x1x8x2xf32, #tpu.memory_space<vmem>>, vector<1x1x8x2xf32>,
    return
  }
  func.func @transform_0(%arg0: i32, %arg1: i32) -> (i32, i32, i32) {
    %c0_i32 = arith.constant 0 : i32
    %c0_i32_0 = arith.constant 0 : i32
    return %arg0, %c0_i32, %arg1 : i32, i32, i32
  }
  func.func @transform_1(%arg0: i32, %arg1: i32) -> (i32, i32) {
    %c0_i32 = arith.constant 0 : i32
    %c0_i32_0 = arith.constant 0 : i32
    %c0_i32_1 = arith.constant 0 : i32
    return %c0_i32, %c0_i32_0 : i32, i32
  }
  func.func @transform_2(%arg0: i32, %arg1: i32) -> (i32, i32) {
    %c0_i32 = arith.constant 0 : i32
    %c0_i32_0 = arith.constant 0 : i32
    %c0_i32_1 = arith.constant 0 : i32
    return %c0_i32, %c0_i32_0 : i32, i32
  }
  func.func @transform_3(%arg0: i32, %arg1: i32) -> (i32, i32, i32, i32) {
    %c0_i32 = arith.constant 0 : i32
    %c0_i32_0 = arith.constant 0 : i32
    %c0_i32_1 = arith.constant 0 : i32
    return %arg0, %arg1, %c0_i32, %c0_i32_0 : i32, i32, i32, i32
  }
}

</mosaic_0001>

<llo_original>
// kernel: tpu_custom_call.1
$region0: #{tpu_custom_call.1}
  #allocation0 [shape = 'u32[]', space=smem, size = 0x4, offset = 0x4, fixed_abs, tag = 'smem constant byte address 0x4 - core index']
  #allocation1 [shape = 'u32[144,128]{1,0:T(1,128)}', space=vmem, size = 0x12000, scoped, tag = 'internal scratch']
  %s0 = inlined_call_operand.vmem [shape: bf16[2,12,16], index: 0, kind: input, shape index: {}]
  %s1 = inlined_call_operand.vmem [shape: bf16[8,12], index: 1, kind: input, shape index: {}]
  %s2 = inlined_call_operand.vmem [shape: f32[8,1], index: 2, kind: input, shape index: {}]
  %s3 = inlined_call_operand.vmem [shape: f32[2,1,8,2], index: 3, kind: output, shape index: {}]
  %s4 = sld [smem:[#allocation0]]
  $region45: #{tpu_custom_call.1} parent=0
    _
  %s6 = ssub.s32 1, %s4
  %s7 = scalar_select 0, %s6, %s4
  loop: start=0, step=1, limit=4
  $region2: #{tpu_custom_call.1} parent=0 // loop_pre_header
    _
  $region3: #{tpu_custom_call.1} parent=0 // loop_header
    %s9 = sphi 0, %s13
    %p10 = scmp.ge.s32.totalorder %s9, 4
    %s16 = sphi 0, %s28
    %s17 = sphi 0, %s24
    %s18 = sphi 0, %s16
    %s19 = sphi 0, %s17
    %s20 = sphi 0, %s18
    %s21 = sphi 0, %s19
    %s33 = sphi 0, %s35
    %s36 = sphi 0, %s33
    %s37 = sphi 0, %s36
    %s53 = sphi 0, %s37
    %s57 = sphi 0, %s57
    %s59 = sphi 0, %s57
    %s60 = sphi 0, %s59
    %s74 = sphi 0, %s60
    %s78 = sphi 0, %s78
    %s80 = sphi 0, %s78
    %s81 = sphi 0, %s80
    %s95 = sphi 0, %s81
    %s103 = sphi 0, %s105
    %s106 = sphi 0, %s103
    %s107 = sphi 0, %s106
    %s123 = sphi 0, %s107
  $region4: #{tpu_custom_call.1} parent=0 // loop_header_branch
    %12 = sbr.rel (%p10) target = $region8
  $region5: #{tpu_custom_call.1} parent=0 // loop_body
    %s14 = ssub.s32 %s9, 1
    %s15 = ssub.s32 %s9, 2
    %s22 = sadd.s32 1, %s17
    %p23 = scmp.ge.s32.totalorder %s22, 1
    %s24 = scalar_select %p23, 0, %s22
    %s25 = sadd.s32 1, %s16
    %s26 = scalar_select %p23, %s25, %s16
    %p27 = scmp.ge.s32.totalorder %s26, 2
    %s28 = scalar_select %p27, 0, %s26
    %s29 = ssub.s32 %s16, %s28
    %s30 = ssub.s32 %s17, %s24
    %s31 = sor.u32 %s29, %s30
    %p32 = scmp.eq.s32.totalorder %s31, 0
    %s34 = sadd.s32 %s33, 1
    %s35 = scalar_select %p32, %s33, %s34
    %p38 = pneg %p32
    %p39 = scmp.eq.s32.totalorder %s9, 1
    %p40 = por %p38, %p39
    %p41 = scmp.ne.s32.totalorder %s33, %s36
    %p42 = scmp.eq.s32.totalorder %s9, 0
    %p43 = por %p41, %p42
    %p44 = scmp.ne.s32.totalorder %s33, %s36
    %p45 = scmp.eq.s32.totalorder %s14, 1
    %p46 = por %p44, %p45
    %p47 = scmp.ne.s32.totalorder %s36, %s37
    %p48 = scmp.eq.s32.totalorder %s14, 0
    %p49 = por %p47, %p48
    %p50 = scmp.ne.s32.totalorder %s36, %s37
    %p51 = scmp.eq.s32.totalorder %s15, 1
    %p52 = por %p50, %p51
    %p54 = scmp.ne.s32.totalorder %s37, %s53
    %p55 = scmp.eq.s32.totalorder %s15, 0
    %p56 = por %p54, %p55
    %s58 = sadd.s32 %s57, 1
    %p61 = scmp.eq.s32.totalorder %s9, 1
    %p62 = scmp.ne.s32.totalorder %s57, %s59
    %p63 = scmp.eq.s32.totalorder %s9, 0
    %p64 = por %p62, %p63
    %p65 = scmp.ne.s32.totalorder %s57, %s59
    %p66 = scmp.eq.s32.totalorder %s14, 1
    %p67 = por %p65, %p66
    %p68 = scmp.ne.s32.totalorder %s59, %s60
    %p69 = scmp.eq.s32.totalorder %s14, 0
    %p70 = por %p68, %p69
    %p71 = scmp.ne.s32.totalorder %s59, %s60
    %p72 = scmp.eq.s32.totalorder %s15, 1
    %p73 = por %p71, %p72
    %p75 = scmp.ne.s32.totalorder %s60, %s74
    %p76 = scmp.eq.s32.totalorder %s15, 0
    %p77 = por %p75, %p76
    %s79 = sadd.s32 %s78, 1
    %p82 = scmp.eq.s32.totalorder %s9, 1
    %p83 = scmp.ne.s32.totalorder %s78, %s80
    %p84 = scmp.eq.s32.totalorder %s9, 0
    %p85 = por %p83, %p84
    %p86 = scmp.ne.s32.totalorder %s78, %s80
    %p87 = scmp.eq.s32.totalorder %s14, 1
    %p88 = por %p86, %p87
    %p89 = scmp.ne.s32.totalorder %s80, %s81
    %p90 = scmp.eq.s32.totalorder %s14, 0
    %p91 = por %p89, %p90
    %p92 = scmp.ne.s32.totalorder %s80, %s81
    %p93 = scmp.eq.s32.totalorder %s15, 1
    %p94 = por %p92, %p93
    %p96 = scmp.ne.s32.totalorder %s81, %s95
    %p97 = scmp.eq.s32.totalorder %s15, 0
    %p98 = por %p96, %p97
    %s99 = ssub.s32 %s16, %s28
    %s100 = ssub.s32 %s17, %s24
    %s101 = sor.u32 %s99, %s100
    %p102 = scmp.eq.s32.totalorder %s101, 0
    %s104 = sadd.s32 %s103, 1
    %s105 = scalar_select %p102, %s103, %s104
    %p108 = pneg %p102
    %p109 = scmp.eq.s32.totalorder %s9, 1
    %p110 = por %p108, %p109
    %p111 = scmp.ne.s32.totalorder %s103, %s106
    %p112 = scmp.eq.s32.totalorder %s9, 0
    %p113 = por %p111, %p112
    %p114 = scmp.ne.s32.totalorder %s103, %s106
    %p115 = scmp.eq.s32.totalorder %s14, 1
    %p116 = por %p114, %p115
    %p117 = scmp.ne.s32.totalorder %s106, %s107
    %p118 = scmp.eq.s32.totalorder %s14, 0
    %p119 = por %p117, %p118
    %p120 = scmp.ne.s32.totalorder %s106, %s107
    %p121 = scmp.eq.s32.totalorder %s15, 1
    %p122 = por %p120, %p121
    %p124 = scmp.ne.s32.totalorder %s107, %s123
    %p125 = scmp.eq.s32.totalorder %s15, 0
    %p126 = por %p124, %p125
    %p127 = scmp.le.s32.totalorder 1, %s9
    %p128 = scmp.lt.s32.totalorder %s9, 3
    %p129 = pnand %p127, %p128
    %p130 = pneg %p129
    // Predicated region
    $region9: #{tpu_custom_call.1} parent=5 // pred_check
      _
    $region10: #{tpu_custom_call.1} parent=5 // pred_check_branch
      %132 = sbr.rel (%p129) target = $region12
    $region11: #{tpu_custom_call.1} parent=5 // pred_region
      %s133 = ssub.s32 %s9, 1
      // Predicated region
      $region13: #{tpu_custom_call.1} parent=11 // pred_check
        %p134 = pneg %p70
      $region14: #{tpu_custom_call.1} parent=11 // pred_check_branch
        %136 = sbr.rel (%p134) target = $region16
      $region15: #{tpu_custom_call.1} parent=11 // pred_region
        _
      $region16: #{tpu_custom_call.1} parent=11 // pred_fallthru
        _
      // Predicated region
      $region17: #{tpu_custom_call.1} parent=11 // pred_check
        %p137 = pneg %p91
      $region18: #{tpu_custom_call.1} parent=11 // pred_check_branch
        %139 = sbr.rel (%p137) target = $region20
      $region19: #{tpu_custom_call.1} parent=11 // pred_region
        _
      $region20: #{tpu_custom_call.1} parent=11 // pred_fallthru
        _
    $region12: #{tpu_custom_call.1} parent=5 // pred_fallthru
      _
    %p140 = scmp.lt.s32.totalorder %s9, 2
    // Predicated region
    $region21: #{tpu_custom_call.1} parent=5 // pred_check
      %p141 = pneg %p140
    $region22: #{tpu_custom_call.1} parent=5 // pred_check_branch
      %143 = sbr.rel (%p141) target = $region24
    $region23: #{tpu_custom_call.1} parent=5 // pred_region
      // Predicated region
      $region25: #{tpu_custom_call.1} parent=23 // pred_check
        %p144 = pneg %p43
      $region26: #{tpu_custom_call.1} parent=23 // pred_check_branch
        %146 = sbr.rel (%p144) target = $region28
      $region27: #{tpu_custom_call.1} parent=23 // pred_region
        %p147 = scmp.lt.s32.totalorder %s16, 1
        %s148 = scalar_select %p147, %s16, 1
        %p149 = scmp.lt.s32.totalorder %s17, 0
        %s150 = scalar_select %p149, %s17, 0
        %s151 = smul.addr %s148, 2
        %s152 = sadd.s32 %s150, %s151
        %s153 = smul.addr %s152, 4
        %s154 = scalar_lea.vmem %s0, %s153
      $region28: #{tpu_custom_call.1} parent=23 // pred_fallthru
        _
    $region24: #{tpu_custom_call.1} parent=5 // pred_fallthru
      _
    %p155 = scmp.le.s32.totalorder 1, %s9
    %p156 = scmp.lt.s32.totalorder %s9, 3
    %p157 = pnand %p155, %p156
    %p158 = pneg %p157
    // Predicated region
    $region29: #{tpu_custom_call.1} parent=5 // pred_check
      _
    $region30: #{tpu_custom_call.1} parent=5 // pred_check_branch
      %160 = sbr.rel (%p157) target = $region32
    $region31: #{tpu_custom_call.1} parent=5 // pred_region
      %s161 = ssub.s32 %s9, 1
      %p162 = scmp.lt.s32.totalorder %s18, 1
      %s163 = scalar_select %p162, %s18, 1
      %p164 = scmp.lt.s32.totalorder %s19, 0
      %s165 = scalar_select %p164, %s19, 0
      %s166 = smul.addr %s163, 2
      %s167 = sadd.s32 %s165, %s166
      %s168 = smul.addr %s167, 4
      %s169 = scalar_lea.vmem %s0, %s168
      %p170 = pneg %p49
      %p171 = pneg %p46
      %p172 = pneg %p70
      %p173 = pneg %p67
      %p174 = pneg %p91
      %p175 = pneg %p88
      %p176 = pneg %p119
      %p177 = pneg %p116
      %p178 = scmp.lt.s32.totalorder %s18, 1
      %s179 = scalar_select %p178, %s18, 1
      %p180 = scmp.lt.s32.totalorder %s19, 0
      %s181 = scalar_select %p180, %s19, 0
      %s182 = sadd.s32 %s181, %s179
      %s183 = smul.addr %s182, 8
      %s184 = scalar_lea.vmem %s3, %s183
      %p185 = scmp.lt.s32.totalorder %s18, 1
      %s186 = scalar_select %p185, %s18, 1
      %p187 = scmp.lt.s32.totalorder %s19, 0
      %s188 = scalar_select %p187, %s19, 0
      %s189 = smul.addr %s186, 2
      %s190 = sadd.s32 %s188, %s189
      %s191 = smul.addr %s190, 4
      %s192 = scalar_lea.vmem %s0, %s191
      %p193 = scmp.lt.s32.totalorder %s18, 1
      %s194 = scalar_select %p193, %s18, 1
      %p195 = scmp.lt.s32.totalorder %s19, 0
      %s196 = scalar_select %p195, %s19, 0
      %s197 = sadd.s32 %s196, %s194
      %s198 = smul.addr %s197, 8
      %s199 = scalar_lea.vmem %s3, %s198
      %v201 = vld [vmem:[%s1] sm:$0xf]
      %v202 = vld [vmem:[%s192] sm:$0xf]
      %v203 = vld [vmem:[%s192 + $0x4] sm:$0x3]
      %v204 = vld [vmem:[%s2] sm:$0xff]
      %206 = vset.pattern.permute.xlu0 0
      %207 = vperm.xlu0 %206, %v204
      %v208 = vpop.permute.xlu0 %207
      %v212 = vunpack.c.l.b16 %v202
      %v213 = vunpack.c.l.b16 %v203
      %v214 = vpack.c.b16 %v213, %v212
      %vm215 = vcmask 97280
      %v217 = vsel %vm215, %v201, 0
      %vm219 = vcmask 1045504
      %v221 = vsel %vm219, %v214, 0
      %223 = vmatprep.subr.bf16.mxu0 0
      %224 = vmatpush1.bf16.msra.mxu0 %v221
      %225 = vmatprep.subr.bf16.mxu0 0
      %226 = vmatpush1.bf16.msra.mxu0 0
      %227 = vmatprep.subr.bf16.mxu0 0
      %228 = vmatpush1.bf16.msra.mxu0 0
      %229 = vmatprep.subr.bf16.mxu0 0
      %230 = vmatpush1.bf16.msra.mxu0 0
      %231 = vmatprep.subr.bf16.mxu0 0
      %232 = vmatpush1.bf16.msra.mxu0 0
      %233 = vmatprep.subr.bf16.mxu0 0
      %234 = vmatpush1.bf16.msra.mxu0 0
      %235 = vmatprep.subr.bf16.mxu0 0
      %236 = vmatpush1.bf16.msra.mxu0 0
      %237 = vmatprep.subr.bf16.mxu0 0
      %238 = vmatpush1.bf16.msra.mxu0 0
      %239 = vmatprep.subr.bf16.mxu0 0
      %240 = vmatpush1.bf16.msra.mxu0 0
      %241 = vmatprep.subr.bf16.mxu0 0
      %242 = vmatpush1.bf16.msra.mxu0 0
      %243 = vmatprep.subr.bf16.mxu0 0
      %244 = vmatpush1.bf16.msra.mxu0 0
      %245 = vmatprep.subr.bf16.mxu0 0
      %246 = vmatpush1.bf16.msra.mxu0 0
      %247 = vmatprep.subr.bf16.mxu0 0
      %248 = vmatpush1.bf16.msra.mxu0 0
      %249 = vmatprep.subr.bf16.mxu0 0
      %250 = vmatpush1.bf16.msra.mxu0 0
      %251 = vmatprep.subr.bf16.mxu0 0
      %252 = vmatpush1.bf16.msra.mxu0 0
      %253 = vmatprep.subr.bf16.mxu0 0
      %254 = vmatpush1.bf16.msra.mxu0 0
      %255 = vmatprep.mubr.bf16.mxu0 0
      %256 = vmatmul.mubr.bf16.gmra.mrb[0].mxu0 %v217
      %v257 = vpop.f32.mrb[0].mxu0
      %v258 = vadd.f32 %v208, %v257
      %v259 = vpop.f32.mrb[0].mxu0
      %v260 = vpop.f32.mrb[0].mxu0
      %v261 = vpop.f32.mrb[0].mxu0
      %262 = vdwg.mxu0
      %vm263 = vcmask 130048
      %v264 = vsel %vm263, %v258, 0.0
      %265 = vadd.xlane.f32.xlu0 %v264
      %v266 = vpop.xlane.xlu0 %265
      %v267 = vmul.f32 %v258, %v258
      %v268 = vsel %vm263, %v267, 0.0
      %269 = vadd.xlane.f32.xlu0 %v268
      %v270 = vpop.xlane.xlu0 %269
      %vm271 = vcmask 7168
      %v272 = vsel %vm271, %v266, %v270
      %vm273 = vcmask 15360
      %274 = vst.msk [vmem:[%s199] sm:$0xff] %vm273, %v272
      %p275 = scmp.lt.s32.totalorder %s18, 1
      %s276 = scalar_select %p275, %s18, 1
      %p277 = scmp.lt.s32.totalorder %s19, 0
      %s278 = scalar_select %p277, %s19, 0
      %s279 = sadd.s32 %s278, %s276
      %s280 = smul.addr %s279, 8
      %s281 = scalar_lea.vmem %s3, %s280
      // Predicated region
      $region33: #{tpu_custom_call.1} parent=31 // pred_check
        %p282 = pneg %p116
      $region34: #{tpu_custom_call.1} parent=31 // pred_check_branch
        %284 = sbr.rel (%p282) target = $region36
      $region35: #{tpu_custom_call.1} parent=31 // pred_region
        _
      $region36: #{tpu_custom_call.1} parent=31 // pred_fallthru
        _
    $region32: #{tpu_custom_call.1} parent=5 // pred_fallthru
      _
    %p285 = scmp.le.s32.totalorder 2, %s9
    // Predicated region
    $region37: #{tpu_custom_call.1} parent=5 // pred_check
      %p286 = pneg %p285
    $region38: #{tpu_custom_call.1} parent=5 // pred_check_branch
      %288 = sbr.rel (%p286) target = $region40
    $region39: #{tpu_custom_call.1} parent=5 // pred_region
      %s289 = ssub.s32 %s9, 2
      // Predicated region
      $region41: #{tpu_custom_call.1} parent=39 // pred_check
        %p290 = pneg %p122
      $region42: #{tpu_custom_call.1} parent=39 // pred_check_branch
        %292 = sbr.rel (%p290) target = $region44
      $region43: #{tpu_custom_call.1} parent=39 // pred_region
        %p293 = scmp.lt.s32.totalorder %s20, 1
        %s294 = scalar_select %p293, %s20, 1
        %p295 = scmp.lt.s32.totalorder %s21, 0
        %s296 = scalar_select %p295, %s21, 0
        %s297 = sadd.s32 %s296, %s294
        %s298 = smul.addr %s297, 8
        %s299 = scalar_lea.vmem %s3, %s298
      $region44: #{tpu_custom_call.1} parent=39 // pred_fallthru
        _
    $region40: #{tpu_custom_call.1} parent=5 // pred_fallthru
      _
  $region6: #{tpu_custom_call.1} parent=0 // loop_footer
    %s13 = sadd.s32 1, %s9
  $region7: #{tpu_custom_call.1} parent=0 // loop_footer_branch
    %8 = sbr.rel target = $region3
  $region8: #{tpu_custom_call.1} parent=0 // loop_exit
    _

</llo_original>
